<compile_context>
chip_gen: v7x
topology: tpu7x:2x2x1
jax: 0.10.0
libtpu: 0.0.40
codegen_flags: <defaults>
</compile_context>

<pallas_src>
import functools

import jax
import jax.numpy as jnp
from jax.experimental import pallas as pl
from jax.experimental.pallas import tpu as pltpu

_LANE = 128          # lane width; channel dims are padded to this
_TILE_CAP = 2048     # source-node tile cap (multiple of 128)


def _round_up(x, m):
    return ((x + m - 1) // m) * m


def _gnn_kernel(a_ref, xs_ref, xd_ref, w_ref, b_ref, inv_ref, o_ref, acc_ref,
                *, cin_p):
    """One (dst-tile i, src-tile k) grid step.

    a_ref  : (TM, TK)          bf16  edge-count adjacency tile (rows=dst, cols=src)
    xs_ref : (TK, Cin_p)       bf16  source-node features for src tile k
    xd_ref : (TM, Cin_p)       f32   dest-node features for dst tile i (const over k)
    w_ref  : (2*Cin_p, Cout_p) f32   stacked [W0 ; W_root], zero padded
    b_ref  : (1, Cout_p)       f32   bias, zero padded
    inv_ref: (TM, 1)           f32   1 / max(deg, 1) for dst rows
    o_ref  : (TM, Cout_p)      f32   output tile
    acc_ref: (TM, 2*Cin_p)     f32   VMEM scratch: [ running A@X | dst features ]
    """
    k = pl.program_id(1)

    @pl.when(k == 0)
    def _init():
        acc_ref[...] = jnp.zeros_like(acc_ref)

    # Dominant work: native bf16 x bf16 MXU matmul with f32 accumulation.
    acc_ref[:, :cin_p] = acc_ref[:, :cin_p] + jnp.dot(
        a_ref[...], xs_ref[...], preferred_element_type=jnp.float32)

    @pl.when(k == pl.num_programs(1) - 1)
    def _finalize():
        # mean-normalize the aggregated half, place root features in the other
        acc_ref[:, :cin_p] = acc_ref[:, :cin_p] * inv_ref[...]
        acc_ref[:, cin_p:] = xd_ref[...]
        # single fused MXU call per dst tile: [H | X] @ [W0 ; W_root]
        out = jnp.dot(acc_ref[...], w_ref[...],
                      preferred_element_type=jnp.float32) + b_ref[...]
        o_ref[...] = jnp.maximum(out, 0.0).astype(o_ref.dtype)


def gnn_forward(x, edge_index, edge_attr, w0, w_root, bias, *, tile_cap=_TILE_CAP):
    """x: (N, Cin) f32, edge_index: (2, E) i32, edge_attr: (E, 1) f32 (unused:
    kernel_size=1 -> spline basis == 1)."""
    del edge_attr
    n, cin = x.shape
    cout = w0.shape[1]

    # ---------------- padded / tiled sizes ----------------
    n128 = _round_up(n, _LANE)
    cin_p = _round_up(cin, _LANE)
    cout_p = _round_up(cout, _LANE)

    # Source tile: as big as the cap allows (A stream is memory-bound).
    tk = min(tile_cap, n128)
    # Destination tile: ensure >= 2 blocks on the "parallel" axis when N allows
    # so v7x's two TensorCores both get work.
    if n128 >= 2 * _LANE:
        tm = min(tile_cap, _round_up(-(-n128 // 2), _LANE))
    else:
        tm = n128

    n_pad_m = _round_up(n, tm)
    n_pad_k = _round_up(n, tk)
    gi, gk = n_pad_m // tm, n_pad_k // tk

    # ---------------- JAX glue (outside kernel) ----------------
    src, dst = edge_index[0], edge_index[1]
    # Unnormalized adjacency built directly as bf16 edge counts (exact for
    # multiplicity <= 256); 1/deg normalization stays f32 and is applied
    # in-kernel after the f32 accumulation.
    adj = (jnp.zeros((n_pad_m, n_pad_k), jnp.bfloat16)
           .at[dst, src].add(jnp.ones(src.shape, jnp.bfloat16)))
    deg = jnp.zeros((n_pad_m,), jnp.float32).at[dst].add(
        jnp.ones(src.shape, jnp.float32))
    inv_deg = (1.0 / jnp.maximum(deg, 1.0)).reshape(n_pad_m, 1)

    # Source features in bf16 (message path), dest features in f32 (root path).
    x_src = jnp.zeros((n_pad_k, cin_p), jnp.bfloat16).at[:n, :cin].set(
        x.astype(jnp.bfloat16))
    x_dst = jnp.zeros((n_pad_m, cin_p), jnp.float32).at[:n, :cin].set(x)

    # Stacked weight [W0 ; W_root] so aggregation + root fuse into one matmul.
    w_cat = jnp.zeros((2 * cin_p, cout_p), jnp.float32)
    w_cat = w_cat.at[:cin, :cout].set(w0)
    w_cat = w_cat.at[cin_p:cin_p + cin, :cout].set(w_root)
    b_p = jnp.zeros((1, cout_p), jnp.float32).at[0, :cout].set(bias)

    # ---------------- VMEM budget (derived, not a flat constant) --------------
    a_buf = 3 if gi * gk >= 3 else 2
    vmem_needed = (a_buf * tm * tk * 2          # adjacency (bf16)
                   + 2 * tk * cin_p * 2         # x_src (bf16)
                   + 2 * tm * cin_p * 4         # x_dst
                   + 2 * 2 * cin_p * cout_p * 4  # stacked weights
                   + 2 * _LANE * cout_p * 4     # bias (padded)
                   + 2 * tm * _LANE * 4         # 1/deg (lane-padded)
                   + 2 * tm * cout_p * 4        # output
                   + tm * 2 * cin_p * 4)        # accumulator scratch
    vmem_limit = min(int(vmem_needed * 1.25) + 8 * 1024 * 1024, 48 * 1024 * 1024)
    vmem_limit = max(vmem_limit, 16 * 1024 * 1024)

    cost = pl.CostEstimate(
        flops=2 * n_pad_m * n_pad_k * cin_p + 2 * n_pad_m * (2 * cin_p) * cout_p,
        transcendentals=0,
        bytes_accessed=(n_pad_m * n_pad_k * 2             # bf16 adjacency (dominant)
                        + gi * n_pad_k * cin_p * 2        # x_src re-read per dst tile
                        + n_pad_m * cin_p * 4             # x_dst
                        + n_pad_m * cout_p * 4            # output
                        + 2 * cin_p * cout_p * 4          # stacked weight
                        + n_pad_m * 4 + cout_p * 4),      # 1/deg + bias
    )

    # Deeper buffering on the adjacency stream (the critical DMA) when useful.
    if gi * gk >= 3:
        a_spec = pl.BlockSpec((tm, tk), lambda i, k: (i, k),
                              pipeline_mode=pl.Buffered(3))
    else:
        a_spec = pl.BlockSpec((tm, tk), lambda i, k: (i, k))

    kernel = functools.partial(_gnn_kernel, cin_p=cin_p)

    out_p = pl.pallas_call(
        kernel,
        out_shape=jax.ShapeDtypeStruct((n_pad_m, cout_p), jnp.float32),
        grid_spec=pltpu.PrefetchScalarGridSpec(
            num_scalar_prefetch=0,
            grid=(gi, gk),                                        # (dst, src) tiles
            in_specs=[
                a_spec,                                           # A tile
                pl.BlockSpec((tk, cin_p), lambda i, k: (k, 0)),   # X_src tile (bf16)
                pl.BlockSpec((tm, cin_p), lambda i, k: (i, 0)),   # X_dst tile (f32)
                pl.BlockSpec((2 * cin_p, cout_p), lambda i, k: (0, 0)),  # [W0;Wr]
                pl.BlockSpec((1, cout_p), lambda i, k: (0, 0)),          # bias
                pl.BlockSpec((tm, 1), lambda i, k: (i, 0)),              # 1/deg
            ],
            out_specs=pl.BlockSpec((tm, cout_p), lambda i, k: (i, 0)),
            scratch_shapes=[pltpu.VMEM((tm, 2 * cin_p), jnp.float32)],
        ),
        compiler_params=pltpu.CompilerParams(
            dimension_semantics=("parallel", "arbitrary"),
            vmem_limit_bytes=vmem_limit,
        ),
        cost_estimate=cost,
    )(adj, x_src, x_dst, w_cat, b_p, inv_deg)

    return out_p[:n, :cout]


def gnn_reference(x, edge_index, w0, w_root, bias):
    src, dst = edge_index[0], edge_index[1]
    n = x.shape[0]
    msg = x @ w0
    summed = jnp.zeros((n, w0.shape[1]), jnp.float32).at[dst].add(msg[src])
    deg = jnp.zeros((n,), jnp.float32).at[dst].add(1.0)
    aggr = summed / jnp.maximum(deg, 1.0)[:, None]
    return jnp.maximum(aggr + x @ w_root + bias[None, :], 0.0)


if __name__ == "__main__":
    key = jax.random.PRNGKey(0)
    k_x, k_ei, k_ea, k_w0, k_wr, k_b = jax.random.split(key, 6)

    N, C_IN, C_OUT, E = 16, 8, 32, 48

    x = jax.random.normal(k_x, (N, C_IN), dtype=jnp.float32)
    edge_index = jax.random.randint(k_ei, (2, E), 0, N, dtype=jnp.int32)
    edge_attr = jax.random.uniform(k_ea, (E, 1), dtype=jnp.float32)

    # SplineConv(in, out, dim=1, K=1) params: weight (1, in, out) -> (in, out),
    # root (in, out), bias (out,)
    w0 = jax.random.normal(k_w0, (C_IN, C_OUT), dtype=jnp.float32) * 0.1
    w_root = jax.random.normal(k_wr, (C_IN, C_OUT), dtype=jnp.float32) * 0.1
    bias = jax.random.normal(k_b, (C_OUT,), dtype=jnp.float32) * 0.1

    out = jax.block_until_ready(
        gnn_forward(x, edge_index, edge_attr, w0, w_root, bias))
    ref = gnn_reference(x, edge_index, w0, w_root, bias)
    assert out.shape == (N, C_OUT)
    max_err = float(jnp.max(jnp.abs(out - ref)))
    # Message path uses bf16 source features / adjacency on the MXU -> ~1e-3
    # relative error; root + bias path is exact f32.
    assert jnp.allclose(out, ref, atol=2e-2, rtol=2e-2), max_err
    print("KERNEL_OK")
</pallas_src>

<mosaic_0001>
module attributes {stable_mosaic.version = 11 : i64} {
  func.func @_gnn_kernel(%arg0: i32, %arg1: i32, %arg2: memref<128x128xbf16, #tpu.memory_space<vmem>>, %arg3: memref<128x128xbf16, #tpu.memory_space<vmem>>, %arg4: memref<128x128xf32, #tpu.memory_space<vmem>>, %arg5: memref<256x128xf32, #tpu.memory_space<vmem>>, %arg6: memref<1x128xf32, #tpu.memory_space<vmem>>, %arg7: memref<128x1xf32, #tpu.memory_space<vmem>>, %arg8: memref<128x128xf32, #tpu.memory_space<vmem>>, %arg9: memref<128x256xf32, #tpu.memory_space<vmem>>) attributes {dimension_semantics = [#tpu.dimension_semantics<parallel>, #tpu.dimension_semantics<arbitrary>], iteration_bounds = array<i64: 1, 1>, scalar_prefetch = 0 : i64, scratch_operands = 1 : i64, tpu.core_type = #tpu.core_type<tc>, window_params = [{transform_indices = @transform_0, window_bounds = array<i64: 128, 128>}, {transform_indices = @transform_1, window_bounds = array<i64: 128, 128>}, {transform_indices = @transform_2, window_bounds = array<i64: 128, 128>}, {pipeline_mode = #tpu.pipeline_mode<synchronous>, transform_indices = @transform_3, window_bounds = array<i64: 256, 128>}, {pipeline_mode = #tpu.pipeline_mode<synchronous>, transform_indices = @transform_4, window_bounds = array<i64: 1, 128>}, {transform_indices = @transform_5, window_bounds = array<i64: 128, 1>}, {transform_indices = @transform_6, window_bounds = array<i64: 128, 128>}]} {
    %c0_i32 = arith.constant 0 : i32
    %0 = arith.cmpi eq, %arg1, %c0_i32 : i32
    %1 = arith.extui %0 : i1 to i32
    %c0_i32_0 = arith.constant 0 : i32
    %2 = arith.cmpi ne, %1, %c0_i32_0 : i32
    scf.if %2 {
      %cst_10 = arith.constant 0.000000e+00 : f32
      %12 = vector.broadcast %cst_10 : f32 to vector<128x256xf32>
      %c0_11 = arith.constant 0 : index
      %c0_12 = arith.constant 0 : index
      %13 = vector.load %arg9[%c0_11, %c0_12] : memref<128x256xf32, #tpu.memory_space<vmem>>, vector<128x256xf32>
      tpu.vector_store %arg9[%c0_11, %c0_12], %12 {strides = array<i32>} : memref<128x256xf32, #tpu.memory_space<vmem>>, vector<128x256xf32>,
    } else {
    }
    %c0 = arith.constant 0 : index
    %c0_1 = arith.constant 0 : index
    %3 = vector.load %arg9[%c0, %c0_1] : memref<128x256xf32, #tpu.memory_space<vmem>>, vector<128x128xf32>
    %c0_2 = arith.constant 0 : index
    %c0_3 = arith.constant 0 : index
    %4 = vector.load %arg2[%c0_2, %c0_3] : memref<128x128xbf16, #tpu.memory_space<vmem>>, vector<128x128xbf16>
    %c0_4 = arith.constant 0 : index
    %c0_5 = arith.constant 0 : index
    %5 = vector.load %arg3[%c0_4, %c0_5] : memref<128x128xbf16, #tpu.memory_space<vmem>>, vector<128x128xbf16>
    %cst = arith.constant dense<0.000000e+00> : vector<128x128xf32>
    %6 = tpu.matmul %4, %5, %cst {dimension_numbers = #tpu.dot_dimension_numbers<[1], [0], [0], [1], [0, 0, 1, 1], [], []>} : vector<128x128xbf16>, vector<128x128xbf16>, vector<128x128xf32> -> vector<128x128xf32>
    %7 = arith.addf %3, %6 : vector<128x128xf32>
    %c0_6 = arith.constant 0 : index
    %c0_7 = arith.constant 0 : index
    %8 = vector.load %arg9[%c0_6, %c0_7] : memref<128x256xf32, #tpu.memory_space<vmem>>, vector<128x128xf32>
    tpu.vector_store %arg9[%c0_6, %c0_7], %7 {strides = array<i32>} : memref<128x256xf32, #tpu.memory_space<vmem>>, vector<128x128xf32>,
    %c0_i32_8 = arith.constant 0 : i32
    %9 = arith.cmpi eq, %arg1, %c0_i32_8 : i32
    %10 = arith.extui %9 : i1 to i32
    %c0_i32_9 = arith.constant 0 : i32
    %11 = arith.cmpi ne, %10, %c0_i32_9 : i32
    scf.if %11 {
      %c0_10 = arith.constant 0 : index
      %c0_11 = arith.constant 0 : index
      %12 = vector.load %arg9[%c0_10, %c0_11] : memref<128x256xf32, #tpu.memory_space<vmem>>, vector<128x128xf32>
      %c0_12 = arith.constant 0 : index
      %c0_13 = arith.constant 0 : index
      %13 = vector.load %arg7[%c0_12, %c0_13] : memref<128x1xf32, #tpu.memory_space<vmem>>, vector<128x1xf32>
      %14 = vector.broadcast %13 : vector<128x1xf32> to vector<128x128xf32>
      %15 = arith.mulf %12, %14 : vector<128x128xf32>
      %c0_14 = arith.constant 0 : index
      %c0_15 = arith.constant 0 : index
      %16 = vector.load %arg9[%c0_14, %c0_15] : memref<128x256xf32, #tpu.memory_space<vmem>>, vector<128x128xf32>
      tpu.vector_store %arg9[%c0_14, %c0_15], %15 {strides = array<i32>} : memref<128x256xf32, #tpu.memory_space<vmem>>, vector<128x128xf32>,
      %c0_16 = arith.constant 0 : index
      %c0_17 = arith.constant 0 : index
      %17 = vector.load %arg4[%c0_16, %c0_17] : memref<128x128xf32, #tpu.memory_space<vmem>>, vector<128x128xf32>
      %c0_18 = arith.constant 0 : index
      %c128 = arith.constant 128 : index
      %18 = vector.load %arg9[%c0_18, %c128] : memref<128x256xf32, #tpu.memory_space<vmem>>, vector<128x128xf32>
      tpu.vector_store %arg9[%c0_18, %c128], %17 {strides = array<i32>} : memref<128x256xf32, #tpu.memory_space<vmem>>, vector<128x128xf32>,
      %c0_19 = arith.constant 0 : index
      %c0_20 = arith.constant 0 : index
      %19 = vector.load %arg9[%c0_19, %c0_20] : memref<128x256xf32, #tpu.memory_space<vmem>>, vector<128x256xf32>
      %c0_21 = arith.constant 0 : index
      %c0_22 = arith.constant 0 : index
      %20 = vector.load %arg5[%c0_21, %c0_22] : memref<256x128xf32, #tpu.memory_space<vmem>>, vector<256x128xf32>
      %cst_23 = arith.constant dense<0.000000e+00> : vector<128x128xf32>
      %21 = tpu.matmul %19, %20, %cst_23 {dimension_numbers = #tpu.dot_dimension_numbers<[1], [0], [0], [1], [0, 0, 1, 1], [], []>} : vector<128x256xf32>, vector<256x128xf32>, vector<128x128xf32> -> vector<128x128xf32>
      %c0_24 = arith.constant 0 : index
      %c0_25 = arith.constant 0 : index
      %22 = vector.load %arg6[%c0_24, %c0_25] : memref<1x128xf32, #tpu.memory_space<vmem>>, vector<1x128xf32>
      %23 = vector.broadcast %22 : vector<1x128xf32> to vector<128x128xf32>
      %24 = arith.addf %21, %23 : vector<128x128xf32>
      %cst_26 = arith.constant 0.000000e+00 : f32
      %25 = vector.broadcast %cst_26 : f32 to vector<128x128xf32>
      %26 = arith.maximumf %24, %25 : vector<128x128xf32>
      %c0_27 = arith.constant 0 : index
      %c0_28 = arith.constant 0 : index
      %27 = vector.load %arg8[%c0_27, %c0_28] : memref<128x128xf32, #tpu.memory_space<vmem>>, vector<128x128xf32>
      tpu.vector_store %arg8[%c0_27, %c0_28], %26 {strides = array<i32>} : memref<128x128xf32, #tpu.memory_space<vmem>>, vector<128x128xf32>,
    } else {
    }
    return
  }
  func.func @transform_0(%arg0: i32, %arg1: i32) -> (i32, i32) {
    %c0_i32 = arith.constant 0 : i32
    return %arg0, %arg1 : i32, i32
  }
  func.func @transform_1(%arg0: i32, %arg1: i32) -> (i32, i32) {
    %c0_i32 = arith.constant 0 : i32
    %c0_i32_0 = arith.constant 0 : i32
    return %arg1, %c0_i32 : i32, i32
  }
  func.func @transform_2(%arg0: i32, %arg1: i32) -> (i32, i32) {
    %c0_i32 = arith.constant 0 : i32
    %c0_i32_0 = arith.constant 0 : i32
    return %arg0, %c0_i32 : i32, i32
  }
  func.func @transform_3(%arg0: i32, %arg1: i32) -> (i32, i32) {
    %c0_i32 = arith.constant 0 : i32
    %c0_i32_0 = arith.constant 0 : i32
    %c0_i32_1 = arith.constant 0 : i32
    return %c0_i32, %c0_i32_0 : i32, i32
  }
  func.func @transform_4(%arg0: i32, %arg1: i32) -> (i32, i32) {
    %c0_i32 = arith.constant 0 : i32
    %c0_i32_0 = arith.constant 0 : i32
    %c0_i32_1 = arith.constant 0 : i32
    return %c0_i32, %c0_i32_0 : i32, i32
  }
  func.func @transform_5(%arg0: i32, %arg1: i32) -> (i32, i32) {
    %c0_i32 = arith.constant 0 : i32
    %c0_i32_0 = arith.constant 0 : i32
    return %arg0, %c0_i32 : i32, i32
  }
  func.func @transform_6(%arg0: i32, %arg1: i32) -> (i32, i32) {
    %c0_i32 = arith.constant 0 : i32
    %c0_i32_0 = arith.constant 0 : i32
    return %arg0, %c0_i32 : i32, i32
  }
}

</mosaic_0001>

<llo_original>
// kernel: tpu_custom_call.1
$region0: #{tpu_custom_call.1}
  #allocation0 [shape = 'u32[]', space=smem, size = 0x4, offset = 0x4, fixed_abs, tag = 'smem constant byte address 0x4 - core index']
  #allocation1 [shape = 'u32[144,128]{1,0:T(1,128)}', space=vmem, size = 0x12000, scoped, tag = 'internal scratch']
  #allocation2 [shape = 'f32[128,256]{1,0:T(8,128)}', space=vmem, size = 0x20000, scoped, tag = 'scratch operand']
  %s0 = inlined_call_operand.hbm [shape: bf16[128,128], index: 0, kind: input, shape index: {}]
  %s1 = inlined_call_operand.hbm [shape: bf16[128,128], index: 1, kind: input, shape index: {}]
  %s2 = inlined_call_operand.vmem [shape: f32[128,128], index: 2, kind: input, shape index: {}]
  %s3 = inlined_call_operand.hbm [shape: f32[256,128], index: 3, kind: input, shape index: {}]
  %s4 = inlined_call_operand.vmem [shape: f32[1,128], index: 4, kind: input, shape index: {}]
  %s5 = inlined_call_operand.vmem [shape: f32[128,1], index: 5, kind: input, shape index: {}]
  %s6 = inlined_call_operand.hbm [shape: f32[128,128], index: 6, kind: output, shape index: {}]
  %s7 = sld [smem:[#allocation0]]
  $region54: #{tpu_custom_call.1} parent=0
    _
  %s9 = ssub.s32 1, %s7
  %s10 = scalar_select 0, %s9, %s7
  $region1: #{tpu_custom_call.1} parent=0
    #allocation3 [shape = 'u8[32768]{0}', space=vmem, size = 0x8000, scoped, tag = 'input window, operand 0, single buffered']
    #allocation4 [shape = 's32[1]{0}', space=sflag, size = 0x4, scoped, tag = 'scoped memory for tpu_custom_call.1']
    #allocation5 [shape = 's32[1]{0}', space=sflag, size = 0x4, scoped, tag = 'scoped memory for tpu_custom_call.1']
    #allocation6 [shape = 'u8[32768]{0}', space=vmem, size = 0x8000, scoped, tag = 'input window, operand 1, single buffered']
    #allocation7 [shape = 's32[1]{0}', space=sflag, size = 0x4, scoped, tag = 'scoped memory for tpu_custom_call.1']
    #allocation8 [shape = 'u8[131072]{0}', space=vmem, size = 0x20000, scoped, tag = 'input window, operand 3, single buffered']
    #allocation9 [shape = 'u8[65536]{0}', space=vmem, size = 0x10000, scoped, tag = 'output window, operand 0, single buffered']
    %11 = vsyncpa [#allocation4], 0
    %12 = vsyncpa [#allocation7], 0
    %13 = vsyncpa [#allocation5], 0
    // Predicated region
    $region2: #{tpu_custom_call.1} parent=1 // pred_check
      _
    $region3: #{tpu_custom_call.1} parent=1 // pred_check_branch
      %15 = sbr.rel (0) target = $region5
    $region4: #{tpu_custom_call.1} parent=1 // pred_region
      %s17 = ssub.s32 1024, 1024
      %18 = vsyncadd [#allocation4], %s17
      %s19 = sshll.u32 [#allocation3], 4
      %s20 = int_to_ptr.vmem [resolvable:$true] %s19
      %25 = dma.hbm_to_vmem [thread:$0]  %s0, 1024, %s20, [#allocation4], 64, 64, 4
    $region5: #{tpu_custom_call.1} parent=1 // pred_fallthru
      _
    // Predicated region
    $region6: #{tpu_custom_call.1} parent=1 // pred_check
      _
    $region7: #{tpu_custom_call.1} parent=1 // pred_check_branch
      %27 = sbr.rel (0) target = $region9
    $region8: #{tpu_custom_call.1} parent=1 // pred_region
      %s29 = ssub.s32 1024, 1024
      %30 = vsyncadd [#allocation7], %s29
      %s31 = sshll.u32 [#allocation6], 4
      %s32 = int_to_ptr.vmem [resolvable:$true] %s31
      %37 = dma.hbm_to_vmem [thread:$0]  %s1, 1024, %s32, [#allocation7], 64, 64, 4
    $region9: #{tpu_custom_call.1} parent=1 // pred_fallthru
      _
    // Predicated region
    $region10: #{tpu_custom_call.1} parent=1 // pred_check
      _
    $region11: #{tpu_custom_call.1} parent=1 // pred_check_branch
      %39 = sbr.rel (0) target = $region13
    $region12: #{tpu_custom_call.1} parent=1 // pred_region
      _
    $region13: #{tpu_custom_call.1} parent=1 // pred_fallthru
      _
    // Predicated region
    $region14: #{tpu_custom_call.1} parent=1 // pred_check
      _
    $region15: #{tpu_custom_call.1} parent=1 // pred_check_branch
      %41 = sbr.rel (0) target = $region17
    $region16: #{tpu_custom_call.1} parent=1 // pred_region
      %s43 = ssub.s32 4096, 4096
      %44 = vsyncadd [#allocation7], %s43
      %s45 = sshll.u32 [#allocation8], 4
      %s46 = int_to_ptr.vmem [resolvable:$true] %s45
      %51 = dma.hbm_to_vmem [thread:$0]  %s3, 4096, %s46, [#allocation7], 128, 128, 8
    $region17: #{tpu_custom_call.1} parent=1 // pred_fallthru
      _
    // Predicated region
    $region18: #{tpu_custom_call.1} parent=1 // pred_check
      _
    $region19: #{tpu_custom_call.1} parent=1 // pred_check_branch
      %53 = sbr.rel (0) target = $region21
    $region20: #{tpu_custom_call.1} parent=1 // pred_region
      _
    $region21: #{tpu_custom_call.1} parent=1 // pred_fallthru
      _
    // Predicated region
    $region22: #{tpu_custom_call.1} parent=1 // pred_check
      _
    $region23: #{tpu_custom_call.1} parent=1 // pred_check_branch
      %55 = sbr.rel (0) target = $region25
    $region24: #{tpu_custom_call.1} parent=1 // pred_region
      _
    $region25: #{tpu_custom_call.1} parent=1 // pred_fallthru
      _
    // Predicated region
    $region26: #{tpu_custom_call.1} parent=1 // pred_check
      _
    $region27: #{tpu_custom_call.1} parent=1 // pred_check_branch
      %57 = sbr.rel (0) target = $region29
    $region28: #{tpu_custom_call.1} parent=1 // pred_region
      %58 = dma.done [#allocation4], 1024
    $region29: #{tpu_custom_call.1} parent=1 // pred_fallthru
      _
    // Predicated region
    $region30: #{tpu_custom_call.1} parent=1 // pred_check
      _
    $region31: #{tpu_custom_call.1} parent=1 // pred_check_branch
      %60 = sbr.rel (0) target = $region33
    $region32: #{tpu_custom_call.1} parent=1 // pred_region
      %61 = dma.done [#allocation7], 1024
    $region33: #{tpu_custom_call.1} parent=1 // pred_fallthru
      _
    // Predicated region
    $region34: #{tpu_custom_call.1} parent=1 // pred_check
      _
    $region35: #{tpu_custom_call.1} parent=1 // pred_check_branch
      %63 = sbr.rel (0) target = $region37
    $region36: #{tpu_custom_call.1} parent=1 // pred_region
      %64 = dma.done [#allocation7], 4096
    $region37: #{tpu_custom_call.1} parent=1 // pred_fallthru
      _
    %p66 = scmp.eq.s32.totalorder 0, 0
    // Predicated region
    $region38: #{tpu_custom_call.1} parent=1 // pred_check
      %p67 = pneg %p66
    $region39: #{tpu_custom_call.1} parent=1 // pred_check_branch
      %69 = sbr.rel (%p67) target = $region41
    $region40: #{tpu_custom_call.1} parent=1 // pred_region
      %70 = vst [vmem:[#allocation2] sm:$0xff] 0.0
      %71 = vst [vmem:[#allocation2 + $0x8] sm:$0xff] 0.0
      %72 = vst [vmem:[#allocation2 + $0x10] sm:$0xff] 0.0
      %73 = vst [vmem:[#allocation2 + $0x18] sm:$0xff] 0.0
      %74 = vst [vmem:[#allocation2 + $0x20] sm:$0xff] 0.0
      %75 = vst [vmem:[#allocation2 + $0x28] sm:$0xff] 0.0
      %76 = vst [vmem:[#allocation2 + $0x30] sm:$0xff] 0.0
      %77 = vst [vmem:[#allocation2 + $0x38] sm:$0xff] 0.0
      %78 = vst [vmem:[#allocation2 + $0x40] sm:$0xff] 0.0
      %79 = vst [vmem:[#allocation2 + $0x48] sm:$0xff] 0.0
      %80 = vst [vmem:[#allocation2 + $0x50] sm:$0xff] 0.0
      %81 = vst [vmem:[#allocation2 + $0x58] sm:$0xff] 0.0
      %82 = vst [vmem:[#allocation2 + $0x60] sm:$0xff] 0.0
      %83 = vst [vmem:[#allocation2 + $0x68] sm:$0xff] 0.0
      %84 = vst [vmem:[#allocation2 + $0x70] sm:$0xff] 0.0
      %85 = vst [vmem:[#allocation2 + $0x78] sm:$0xff] 0.0
      %86 = vst [vmem:[#allocation2 + $0x80] sm:$0xff] 0.0
      %87 = vst [vmem:[#allocation2 + $0x88] sm:$0xff] 0.0
      %88 = vst [vmem:[#allocation2 + $0x90] sm:$0xff] 0.0
      %89 = vst [vmem:[#allocation2 + $0x98] sm:$0xff] 0.0
      %90 = vst [vmem:[#allocation2 + $0xa0] sm:$0xff] 0.0
      %91 = vst [vmem:[#allocation2 + $0xa8] sm:$0xff] 0.0
      %92 = vst [vmem:[#allocation2 + $0xb0] sm:$0xff] 0.0
      %93 = vst [vmem:[#allocation2 + $0xb8] sm:$0xff] 0.0
      %94 = vst [vmem:[#allocation2 + $0xc0] sm:$0xff] 0.0
      %95 = vst [vmem:[#allocation2 + $0xc8] sm:$0xff] 0.0
      %96 = vst [vmem:[#allocation2 + $0xd0] sm:$0xff] 0.0
      %97 = vst [vmem:[#allocation2 + $0xd8] sm:$0xff] 0.0
      %98 = vst [vmem:[#allocation2 + $0xe0] sm:$0xff] 0.0
      %99 = vst [vmem:[#allocation2 + $0xe8] sm:$0xff] 0.0
      %100 = vst [vmem:[#allocation2 + $0xf0] sm:$0xff] 0.0
      %101 = vst [vmem:[#allocation2 + $0xf8] sm:$0xff] 0.0
    $region41: #{tpu_custom_call.1} parent=1 // pred_fallthru
      _
    %v102 = vld [vmem:[#allocation2] sm:$0xff]
    %v103 = vld [vmem:[#allocation2 + $0x10] sm:$0xff]
    %v104 = vld [vmem:[#allocation2 + $0x20] sm:$0xff]
    %v105 = vld [vmem:[#allocation2 + $0x30] sm:$0xff]
    %v106 = vld [vmem:[#allocation2 + $0x40] sm:$0xff]
    %v107 = vld [vmem:[#allocation2 + $0x50] sm:$0xff]
    %v108 = vld [vmem:[#allocation2 + $0x60] sm:$0xff]
    %v109 = vld [vmem:[#allocation2 + $0x70] sm:$0xff]
    %v110 = vld [vmem:[#allocation2 + $0x80] sm:$0xff]
    %v111 = vld [vmem:[#allocation2 + $0x90] sm:$0xff]
    %v112 = vld [vmem:[#allocation2 + $0xa0] sm:$0xff]
    %v113 = vld [vmem:[#allocation2 + $0xb0] sm:$0xff]
    %v114 = vld [vmem:[#allocation2 + $0xc0] sm:$0xff]
    %v115 = vld [vmem:[#allocation2 + $0xd0] sm:$0xff]
    %v116 = vld [vmem:[#allocation2 + $0xe0] sm:$0xff]
    %v117 = vld [vmem:[#allocation2 + $0xf0] sm:$0xff]
    %v118 = vld [vmem:[#allocation3] sm:$0xf]
    %v119 = vld [vmem:[#allocation3 + $0x4] sm:$0xf]
    %v120 = vld [vmem:[#allocation3 + $0x8] sm:$0xf]
    %v121 = vld [vmem:[#allocation3 + $0xc] sm:$0xf]
    %v122 = vld [vmem:[#allocation3 + $0x10] sm:$0xf]
    %v123 = vld [vmem:[#allocation3 + $0x14] sm:$0xf]
    %v124 = vld [vmem:[#allocation3 + $0x18] sm:$0xf]
    %v125 = vld [vmem:[#allocation3 + $0x1c] sm:$0xf]
    %v126 = vld [vmem:[#allocation3 + $0x20] sm:$0xf]
    %v127 = vld [vmem:[#allocation3 + $0x24] sm:$0xf]
    %v128 = vld [vmem:[#allocation3 + $0x28] sm:$0xf]
    %v129 = vld [vmem:[#allocation3 + $0x2c] sm:$0xf]
    %v130 = vld [vmem:[#allocation3 + $0x30] sm:$0xf]
    %v131 = vld [vmem:[#allocation3 + $0x34] sm:$0xf]
    %v132 = vld [vmem:[#allocation3 + $0x38] sm:$0xf]
    %v133 = vld [vmem:[#allocation3 + $0x3c] sm:$0xf]
    %v134 = vld [vmem:[#allocation6] sm:$0xf]
    %v135 = vld [vmem:[#allocation6 + $0x4] sm:$0xf]
    %v136 = vld [vmem:[#allocation6 + $0x8] sm:$0xf]
    %v137 = vld [vmem:[#allocation6 + $0xc] sm:$0xf]
    %v138 = vld [vmem:[#allocation6 + $0x10] sm:$0xf]
    %v139 = vld [vmem:[#allocation6 + $0x14] sm:$0xf]
    %v140 = vld [vmem:[#allocation6 + $0x18] sm:$0xf]
    %v141 = vld [vmem:[#allocation6 + $0x1c] sm:$0xf]
    %v142 = vld [vmem:[#allocation6 + $0x20] sm:$0xf]
    %v143 = vld [vmem:[#allocation6 + $0x24] sm:$0xf]
    %v144 = vld [vmem:[#allocation6 + $0x28] sm:$0xf]
    %v145 = vld [vmem:[#allocation6 + $0x2c] sm:$0xf]
    %v146 = vld [vmem:[#allocation6 + $0x30] sm:$0xf]
    %v147 = vld [vmem:[#allocation6 + $0x34] sm:$0xf]
    %v148 = vld [vmem:[#allocation6 + $0x38] sm:$0xf]
    %v149 = vld [vmem:[#allocation6 + $0x3c] sm:$0xf]
    %v166 = vunpack.c.l.b16 %v118
    %v167 = vunpack.c.l.b16 %v119
    %v168 = vunpack.c.l.b16 %v120
    %v169 = vunpack.c.l.b16 %v121
    %v170 = vunpack.c.l.b16 %v122
    %v171 = vunpack.c.l.b16 %v123
    %v172 = vunpack.c.l.b16 %v124
    %v173 = vunpack.c.l.b16 %v125
    %v174 = vunpack.c.l.b16 %v126
    %v175 = vunpack.c.l.b16 %v127
    %v176 = vunpack.c.l.b16 %v128
    %v177 = vunpack.c.l.b16 %v129
    %v178 = vunpack.c.l.b16 %v130
    %v179 = vunpack.c.l.b16 %v131
    %v180 = vunpack.c.l.b16 %v132
    %v181 = vunpack.c.l.b16 %v133
    %v182 = vpack.c.b16 %v167, %v166
    %v183 = vpack.c.b16 %v169, %v168
    %v184 = vpack.c.b16 %v171, %v170
    %v185 = vpack.c.b16 %v173, %v172
    %v186 = vpack.c.b16 %v175, %v174
    %v187 = vpack.c.b16 %v177, %v176
    %v188 = vpack.c.b16 %v179, %v178
    %v189 = vpack.c.b16 %v181, %v180
    %v214 = vunpack.c.l.b16 %v134
    %v215 = vunpack.c.l.b16 %v135
    %v216 = vunpack.c.l.b16 %v136
    %v217 = vunpack.c.l.b16 %v137
    %v218 = vunpack.c.l.b16 %v138
    %v219 = vunpack.c.l.b16 %v139
    %v220 = vunpack.c.l.b16 %v140
    %v221 = vunpack.c.l.b16 %v141
    %v222 = vunpack.c.l.b16 %v142
    %v223 = vunpack.c.l.b16 %v143
    %v224 = vunpack.c.l.b16 %v144
    %v225 = vunpack.c.l.b16 %v145
    %v226 = vunpack.c.l.b16 %v146
    %v227 = vunpack.c.l.b16 %v147
    %v228 = vunpack.c.l.b16 %v148
    %v229 = vunpack.c.l.b16 %v149
    %v230 = vpack.c.b16 %v215, %v214
    %v231 = vpack.c.b16 %v217, %v216
    %v232 = vpack.c.b16 %v219, %v218
    %v233 = vpack.c.b16 %v221, %v220
    %v234 = vpack.c.b16 %v223, %v222
    %v235 = vpack.c.b16 %v225, %v224
    %v236 = vpack.c.b16 %v227, %v226
    %v237 = vpack.c.b16 %v229, %v228
    %246 = vmatprep.subr.bf16.mxu0 0
    %247 = vmatpush1.bf16.msra.mxu0 %v230
    %248 = vmatprep.subr.bf16.mxu0 0
    %249 = vmatpush1.bf16.msra.mxu0 %v231
    %250 = vmatprep.subr.bf16.mxu0 0
    %251 = vmatpush1.bf16.msra.mxu0 %v232
    %252 = vmatprep.subr.bf16.mxu0 0
    %253 = vmatpush1.bf16.msra.mxu0 %v233
    %254 = vmatprep.subr.bf16.mxu0 0
    %255 = vmatpush1.bf16.msra.mxu0 %v234
    %256 = vmatprep.subr.bf16.mxu0 0
    %257 = vmatpush1.bf16.msra.mxu0 %v235
    %258 = vmatprep.subr.bf16.mxu0 0
    %259 = vmatpush1.bf16.msra.mxu0 %v236
    %260 = vmatprep.subr.bf16.mxu0 0
    %261 = vmatpush1.bf16.msra.mxu0 %v237
    %262 = vmatprep.subr.bf16.mxu0 0
    %263 = vmatpush1.bf16.msra.mxu0 0
    %264 = vmatprep.subr.bf16.mxu0 0
    %265 = vmatpush1.bf16.msra.mxu0 0
    %266 = vmatprep.subr.bf16.mxu0 0
    %267 = vmatpush1.bf16.msra.mxu0 0
    %268 = vmatprep.subr.bf16.mxu0 0
    %269 = vmatpush1.bf16.msra.mxu0 0
    %270 = vmatprep.subr.bf16.mxu0 0
    %271 = vmatpush1.bf16.msra.mxu0 0
    %272 = vmatprep.subr.bf16.mxu0 0
    %273 = vmatpush1.bf16.msra.mxu0 0
    %274 = vmatprep.subr.bf16.mxu0 0
    %275 = vmatpush1.bf16.msra.mxu0 0
    %276 = vmatprep.subr.bf16.mxu0 0
    %277 = vmatpush1.bf16.msra.mxu0 0
    %278 = vmatprep.mubr.bf16.mxu0 0
    %279 = vmatmul.mubr.bf16.gmra.mrb[0].mxu0 %v182
    %v280 = vpop.f32.mrb[0].mxu0
    %v281 = vadd.f32 0.0, %v280
    %v282 = vpop.f32.mrb[0].mxu0
    %v283 = vpop.f32.mrb[0].mxu0
    %v284 = vadd.f32 0.0, %v283
    %v285 = vpop.f32.mrb[0].mxu0
    %286 = vmatprep.mubr.bf16.mxu0 0
    %287 = vmatmul.mubr.bf16.gmra.mrb[0].mxu0 %v183
    %v288 = vpop.f32.mrb[0].mxu0
    %v289 = vadd.f32 0.0, %v288
    %v290 = vpop.f32.mrb[0].mxu0
    %v291 = vpop.f32.mrb[0].mxu0
    %v292 = vadd.f32 0.0, %v291
    %v293 = vpop.f32.mrb[0].mxu0
    %294 = vmatprep.mubr.bf16.mxu0 0
    %295 = vmatmul.mubr.bf16.gmra.mrb[0].mxu0 %v184
    %v296 = vpop.f32.mrb[0].mxu0
    %v297 = vadd.f32 0.0, %v296
    %v298 = vpop.f32.mrb[0].mxu0
    %v299 = vpop.f32.mrb[0].mxu0
    %v300 = vadd.f32 0.0, %v299
    %v301 = vpop.f32.mrb[0].mxu0
    %302 = vmatprep.mubr.bf16.mxu0 0
    %303 = vmatmul.mubr.bf16.gmra.mrb[0].mxu0 %v185
    %v304 = vpop.f32.mrb[0].mxu0
    %v305 = vadd.f32 0.0, %v304
    %v306 = vpop.f32.mrb[0].mxu0
    %v307 = vpop.f32.mrb[0].mxu0
    %v308 = vadd.f32 0.0, %v307
    %v309 = vpop.f32.mrb[0].mxu0
    %310 = vmatprep.mubr.bf16.mxu0 0
    %311 = vmatmul.mubr.bf16.gmra.mrb[0].mxu0 %v186
    %v312 = vpop.f32.mrb[0].mxu0
    %v313 = vadd.f32 0.0, %v312
    %v314 = vpop.f32.mrb[0].mxu0
    %v315 = vpop.f32.mrb[0].mxu0
    %v316 = vadd.f32 0.0, %v315
    %v317 = vpop.f32.mrb[0].mxu0
    %318 = vmatprep.mubr.bf16.mxu0 0
    %319 = vmatmul.mubr.bf16.gmra.mrb[0].mxu0 %v187
    %v320 = vpop.f32.mrb[0].mxu0
    %v321 = vadd.f32 0.0, %v320
    %v322 = vpop.f32.mrb[0].mxu0
    %v323 = vpop.f32.mrb[0].mxu0
    %v324 = vadd.f32 0.0, %v323
    %v325 = vpop.f32.mrb[0].mxu0
    %326 = vmatprep.mubr.bf16.mxu0 0
    %327 = vmatmul.mubr.bf16.gmra.mrb[0].mxu0 %v188
    %v328 = vpop.f32.mrb[0].mxu0
    %v329 = vadd.f32 0.0, %v328
    %v330 = vpop.f32.mrb[0].mxu0
    %v331 = vpop.f32.mrb[0].mxu0
    %v332 = vadd.f32 0.0, %v331
    %v333 = vpop.f32.mrb[0].mxu0
    %334 = vmatprep.mubr.bf16.mxu0 0
    %335 = vmatmul.mubr.bf16.gmra.mrb[0].mxu0 %v189
    %v336 = vpop.f32.mrb[0].mxu0
    %v337 = vadd.f32 0.0, %v336
    %v338 = vpop.f32.mrb[0].mxu0
    %v339 = vpop.f32.mrb[0].mxu0
    %v340 = vadd.f32 0.0, %v339
    %v341 = vpop.f32.mrb[0].mxu0
    %342 = vdwg.mxu0
    %v343 = vadd.f32 %v102, %v281
    %v344 = vadd.f32 %v103, %v284
    %v345 = vadd.f32 %v104, %v289
    %v346 = vadd.f32 %v105, %v292
    %v347 = vadd.f32 %v106, %v297
    %v348 = vadd.f32 %v107, %v300
    %v349 = vadd.f32 %v108, %v305
    %v350 = vadd.f32 %v109, %v308
    %v351 = vadd.f32 %v110, %v313
    %v352 = vadd.f32 %v111, %v316
    %v353 = vadd.f32 %v112, %v321
    %v354 = vadd.f32 %v113, %v324
    %v355 = vadd.f32 %v114, %v329
    %v356 = vadd.f32 %v115, %v332
    %v357 = vadd.f32 %v116, %v337
    %v358 = vadd.f32 %v117, %v340
    %359 = vst [vmem:[#allocation2] sm:$0xff] %v343
    %360 = vst [vmem:[#allocation2 + $0x10] sm:$0xff] %v344
    %361 = vst [vmem:[#allocation2 + $0x20] sm:$0xff] %v345
    %362 = vst [vmem:[#allocation2 + $0x30] sm:$0xff] %v346
    %363 = vst [vmem:[#allocation2 + $0x40] sm:$0xff] %v347
    %364 = vst [vmem:[#allocation2 + $0x50] sm:$0xff] %v348
    %365 = vst [vmem:[#allocation2 + $0x60] sm:$0xff] %v349
    %366 = vst [vmem:[#allocation2 + $0x70] sm:$0xff] %v350
    %367 = vst [vmem:[#allocation2 + $0x80] sm:$0xff] %v351
    %368 = vst [vmem:[#allocation2 + $0x90] sm:$0xff] %v352
    %369 = vst [vmem:[#allocation2 + $0xa0] sm:$0xff] %v353
    %370 = vst [vmem:[#allocation2 + $0xb0] sm:$0xff] %v354
    %371 = vst [vmem:[#allocation2 + $0xc0] sm:$0xff] %v355
    %372 = vst [vmem:[#allocation2 + $0xd0] sm:$0xff] %v356
    %373 = vst [vmem:[#allocation2 + $0xe0] sm:$0xff] %v357
    %374 = vst [vmem:[#allocation2 + $0xf0] sm:$0xff] %v358
    // Predicated region
    $region42: #{tpu_custom_call.1} parent=1 // pred_check
      %p375 = pneg %p66
    $region43: #{tpu_custom_call.1} parent=1 // pred_check_branch
      %377 = sbr.rel (%p375) target = $region45
    $region44: #{tpu_custom_call.1} parent=1 // pred_region
      %v378 = vld [vmem:[#allocation2] sm:$0xff]
      %v379 = vld [vmem:[#allocation2 + $0x10] sm:$0xff]
      %v380 = vld [vmem:[#allocation2 + $0x20] sm:$0xff]
      %v381 = vld [vmem:[#allocation2 + $0x30] sm:$0xff]
      %v382 = vld [vmem:[#allocation2 + $0x40] sm:$0xff]
      %v383 = vld [vmem:[#allocation2 + $0x50] sm:$0xff]
      %v384 = vld [vmem:[#allocation2 + $0x60] sm:$0xff]
      %v385 = vld [vmem:[#allocation2 + $0x70] sm:$0xff]
      %v386 = vld [vmem:[#allocation2 + $0x80] sm:$0xff]
      %v387 = vld [vmem:[#allocation2 + $0x90] sm:$0xff]
      %v388 = vld [vmem:[#allocation2 + $0xa0] sm:$0xff]
      %v389 = vld [vmem:[#allocation2 + $0xb0] sm:$0xff]
      %v390 = vld [vmem:[#allocation2 + $0xc0] sm:$0xff]
      %v391 = vld [vmem:[#allocation2 + $0xd0] sm:$0xff]
      %v392 = vld [vmem:[#allocation2 + $0xe0] sm:$0xff]
      %v393 = vld [vmem:[#allocation2 + $0xf0] sm:$0xff]
      %v394 = vld [vmem:[%s5] sm:$0xff]
      %v395 = vld [vmem:[%s5 + $0x8] sm:$0xff]
      %v396 = vld [vmem:[%s5 + $0x10] sm:$0xff]
      %v397 = vld [vmem:[%s5 + $0x18] sm:$0xff]
      %v398 = vld [vmem:[%s5 + $0x20] sm:$0xff]
      %v399 = vld [vmem:[%s5 + $0x28] sm:$0xff]
      %v400 = vld [vmem:[%s5 + $0x30] sm:$0xff]
      %v401 = vld [vmem:[%s5 + $0x38] sm:$0xff]
      %v402 = vld [vmem:[%s5 + $0x40] sm:$0xff]
      %v403 = vld [vmem:[%s5 + $0x48] sm:$0xff]
      %v404 = vld [vmem:[%s5 + $0x50] sm:$0xff]
      %v405 = vld [vmem:[%s5 + $0x58] sm:$0xff]
      %v406 = vld [vmem:[%s5 + $0x60] sm:$0xff]
      %v407 = vld [vmem:[%s5 + $0x68] sm:$0xff]
      %v408 = vld [vmem:[%s5 + $0x70] sm:$0xff]
      %v409 = vld [vmem:[%s5 + $0x78] sm:$0xff]
      %411 = vset.pattern.permute.xlu0 0
      %412 = vperm.xlu0 %411, %v394
      %v413 = vpop.permute.xlu0 %412
      %416 = vset.pattern.permute.xlu0 0
      %417 = vperm.xlu0 %416, %v395
      %v418 = vpop.permute.xlu0 %417
      %421 = vset.pattern.permute.xlu0 0
      %422 = vperm.xlu0 %421, %v396
      %v423 = vpop.permute.xlu0 %422
      %426 = vset.pattern.permute.xlu0 0
      %427 = vperm.xlu0 %426, %v397
      %v428 = vpop.permute.xlu0 %427
      %431 = vset.pattern.permute.xlu0 0
      %432 = vperm.xlu0 %431, %v398
      %v433 = vpop.permute.xlu0 %432
      %436 = vset.pattern.permute.xlu0 0
      %437 = vperm.xlu0 %436, %v399
      %v438 = vpop.permute.xlu0 %437
      %441 = vset.pattern.permute.xlu0 0
      %442 = vperm.xlu0 %441, %v400
      %v443 = vpop.permute.xlu0 %442
      %446 = vset.pattern.permute.xlu0 0
      %447 = vperm.xlu0 %446, %v401
      %v448 = vpop.permute.xlu0 %447
      %451 = vset.pattern.permute.xlu0 0
      %452 = vperm.xlu0 %451, %v402
      %v453 = vpop.permute.xlu0 %452
      %456 = vset.pattern.permute.xlu0 0
      %457 = vperm.xlu0 %456, %v403
      %v458 = vpop.permute.xlu0 %457
      %461 = vset.pattern.permute.xlu0 0
      %462 = vperm.xlu0 %461, %v404
      %v463 = vpop.permute.xlu0 %462
      %466 = vset.pattern.permute.xlu0 0
      %467 = vperm.xlu0 %466, %v405
      %v468 = vpop.permute.xlu0 %467
      %471 = vset.pattern.permute.xlu0 0
      %472 = vperm.xlu0 %471, %v406
      %v473 = vpop.permute.xlu0 %472
      %476 = vset.pattern.permute.xlu0 0
      %477 = vperm.xlu0 %476, %v407
      %v478 = vpop.permute.xlu0 %477
      %481 = vset.pattern.permute.xlu0 0
      %482 = vperm.xlu0 %481, %v408
      %v483 = vpop.permute.xlu0 %482
      %486 = vset.pattern.permute.xlu0 0
      %487 = vperm.xlu0 %486, %v409
      %v488 = vpop.permute.xlu0 %487
      %v490 = vmul.f32 %v378, %v413
      %v491 = vmul.f32 %v379, %v418
      %v492 = vmul.f32 %v380, %v423
      %v493 = vmul.f32 %v381, %v428
      %v494 = vmul.f32 %v382, %v433
      %v495 = vmul.f32 %v383, %v438
      %v496 = vmul.f32 %v384, %v443
      %v497 = vmul.f32 %v385, %v448
      %v498 = vmul.f32 %v386, %v453
      %v499 = vmul.f32 %v387, %v458
      %v500 = vmul.f32 %v388, %v463
      %v501 = vmul.f32 %v389, %v468
      %v502 = vmul.f32 %v390, %v473
      %v503 = vmul.f32 %v391, %v478
      %v504 = vmul.f32 %v392, %v483
      %v505 = vmul.f32 %v393, %v488
      %506 = vst [vmem:[#allocation2] sm:$0xff] %v490
      %507 = vst [vmem:[#allocation2 + $0x10] sm:$0xff] %v491
      %508 = vst [vmem:[#allocation2 + $0x20] sm:$0xff] %v492
      %509 = vst [vmem:[#allocation2 + $0x30] sm:$0xff] %v493
      %510 = vst [vmem:[#allocation2 + $0x40] sm:$0xff] %v494
      %511 = vst [vmem:[#allocation2 + $0x50] sm:$0xff] %v495
      %512 = vst [vmem:[#allocation2 + $0x60] sm:$0xff] %v496
      %513 = vst [vmem:[#allocation2 + $0x70] sm:$0xff] %v497
      %514 = vst [vmem:[#allocation2 + $0x80] sm:$0xff] %v498
      %515 = vst [vmem:[#allocation2 + $0x90] sm:$0xff] %v499
      %516 = vst [vmem:[#allocation2 + $0xa0] sm:$0xff] %v500
      %517 = vst [vmem:[#allocation2 + $0xb0] sm:$0xff] %v501
      %518 = vst [vmem:[#allocation2 + $0xc0] sm:$0xff] %v502
      %519 = vst [vmem:[#allocation2 + $0xd0] sm:$0xff] %v503
      %520 = vst [vmem:[#allocation2 + $0xe0] sm:$0xff] %v504
      %521 = vst [vmem:[#allocation2 + $0xf0] sm:$0xff] %v505
      %v522 = vld [vmem:[%s2] sm:$0xff]
      %v523 = vld [vmem:[%s2 + $0x8] sm:$0xff]
      %v524 = vld [vmem:[%s2 + $0x10] sm:$0xff]
      %v525 = vld [vmem:[%s2 + $0x18] sm:$0xff]
      %v526 = vld [vmem:[%s2 + $0x20] sm:$0xff]
      %v527 = vld [vmem:[%s2 + $0x28] sm:$0xff]
      %v528 = vld [vmem:[%s2 + $0x30] sm:$0xff]
      %v529 = vld [vmem:[%s2 + $0x38] sm:$0xff]
      %v530 = vld [vmem:[%s2 + $0x40] sm:$0xff]
      %v531 = vld [vmem:[%s2 + $0x48] sm:$0xff]
      %v532 = vld [vmem:[%s2 + $0x50] sm:$0xff]
      %v533 = vld [vmem:[%s2 + $0x58] sm:$0xff]
      %v534 = vld [vmem:[%s2 + $0x60] sm:$0xff]
      %v535 = vld [vmem:[%s2 + $0x68] sm:$0xff]
      %v536 = vld [vmem:[%s2 + $0x70] sm:$0xff]
      %v537 = vld [vmem:[%s2 + $0x78] sm:$0xff]
      %538 = vst [vmem:[#allocation2 + $0x8] sm:$0xff] %v522
      %539 = vst [vmem:[#allocation2 + $0x18] sm:$0xff] %v523
      %540 = vst [vmem:[#allocation2 + $0x28] sm:$0xff] %v524
      %541 = vst [vmem:[#allocation2 + $0x38] sm:$0xff] %v525
      %542 = vst [vmem:[#allocation2 + $0x48] sm:$0xff] %v526
      %543 = vst [vmem:[#allocation2 + $0x58] sm:$0xff] %v527
      %544 = vst [vmem:[#allocation2 + $0x68] sm:$0xff] %v528
      %545 = vst [vmem:[#allocation2 + $0x78] sm:$0xff] %v529
      %546 = vst [vmem:[#allocation2 + $0x88] sm:$0xff] %v530
      %547 = vst [vmem:[#allocation2 + $0x98] sm:$0xff] %v531
      %548 = vst [vmem:[#allocation2 + $0xa8] sm:$0xff] %v532
      %549 = vst [vmem:[#allocation2 + $0xb8] sm:$0xff] %v533
      %550 = vst [vmem:[#allocation2 + $0xc8] sm:$0xff] %v534
      %551 = vst [vmem:[#allocation2 + $0xd8] sm:$0xff] %v535
      %552 = vst [vmem:[#allocation2 + $0xe8] sm:$0xff] %v536
      %553 = vst [vmem:[#allocation2 + $0xf8] sm:$0xff] %v537
      %v554 = vld [vmem:[#allocation2] sm:$0xff]
      %v555 = vld [vmem:[#allocation2 + $0x8] sm:$0xff]
      %v556 = vld [vmem:[#allocation2 + $0x10] sm:$0xff]
      %v557 = vld [vmem:[#allocation2 + $0x18] sm:$0xff]
      %v558 = vld [vmem:[#allocation2 + $0x20] sm:$0xff]
      %v559 = vld [vmem:[#allocation2 + $0x28] sm:$0xff]
      %v560 = vld [vmem:[#allocation2 + $0x30] sm:$0xff]
      %v561 = vld [vmem:[#allocation2 + $0x38] sm:$0xff]
      %v562 = vld [vmem:[#allocation2 + $0x40] sm:$0xff]
      %v563 = vld [vmem:[#allocation2 + $0x48] sm:$0xff]
      %v564 = vld [vmem:[#allocation2 + $0x50] sm:$0xff]
      %v565 = vld [vmem:[#allocation2 + $0x58] sm:$0xff]
      %v566 = vld [vmem:[#allocation2 + $0x60] sm:$0xff]
      %v567 = vld [vmem:[#allocation2 + $0x68] sm:$0xff]
      %v568 = vld [vmem:[#allocation2 + $0x70] sm:$0xff]
      %v569 = vld [vmem:[#allocation2 + $0x78] sm:$0xff]
      %v570 = vld [vmem:[#allocation2 + $0x80] sm:$0xff]
      %v571 = vld [vmem:[#allocation2 + $0x88] sm:$0xff]
      %v572 = vld [vmem:[#allocation2 + $0x90] sm:$0xff]
      %v573 = vld [vmem:[#allocation2 + $0x98] sm:$0xff]
      %v574 = vld [vmem:[#allocation2 + $0xa0] sm:$0xff]
      %v575 = vld [vmem:[#allocation2 + $0xa8] sm:$0xff]
      %v576 = vld [vmem:[#allocation2 + $0xb0] sm:$0xff]
      %v577 = vld [vmem:[#allocation2 + $0xb8] sm:$0xff]
      %v578 = vld [vmem:[#allocation2 + $0xc0] sm:$0xff]
      %v579 = vld [vmem:[#allocation2 + $0xc8] sm:$0xff]
      %v580 = vld [vmem:[#allocation2 + $0xd0] sm:$0xff]
      %v581 = vld [vmem:[#allocation2 + $0xd8] sm:$0xff]
      %v582 = vld [vmem:[#allocation2 + $0xe0] sm:$0xff]
      %v583 = vld [vmem:[#allocation2 + $0xe8] sm:$0xff]
      %v584 = vld [vmem:[#allocation2 + $0xf0] sm:$0xff]
      %v585 = vld [vmem:[#allocation2 + $0xf8] sm:$0xff]
      %v586 = vld [vmem:[#allocation8] sm:$0xff]
      %v587 = vld [vmem:[#allocation8 + $0x8] sm:$0xff]
      %v588 = vld [vmem:[#allocation8 + $0x10] sm:$0xff]
      %v589 = vld [vmem:[#allocation8 + $0x18] sm:$0xff]
      %v590 = vld [vmem:[#allocation8 + $0x20] sm:$0xff]
      %v591 = vld [vmem:[#allocation8 + $0x28] sm:$0xff]
      %v592 = vld [vmem:[#allocation8 + $0x30] sm:$0xff]
      %v593 = vld [vmem:[#allocation8 + $0x38] sm:$0xff]
      %v594 = vld [vmem:[#allocation8 + $0x40] sm:$0xff]
      %v595 = vld [vmem:[#allocation8 + $0x48] sm:$0xff]
      %v596 = vld [vmem:[#allocation8 + $0x50] sm:$0xff]
      %v597 = vld [vmem:[#allocation8 + $0x58] sm:$0xff]
      %v598 = vld [vmem:[#allocation8 + $0x60] sm:$0xff]
      %v599 = vld [vmem:[#allocation8 + $0x68] sm:$0xff]
      %v600 = vld [vmem:[#allocation8 + $0x70] sm:$0xff]
      %v601 = vld [vmem:[#allocation8 + $0x78] sm:$0xff]
      %v602 = vld [vmem:[#allocation8 + $0x80] sm:$0xff]
      %v603 = vld [vmem:[#allocation8 + $0x88] sm:$0xff]
      %v604 = vld [vmem:[#allocation8 + $0x90] sm:$0xff]
      %v605 = vld [vmem:[#allocation8 + $0x98] sm:$0xff]
      %v606 = vld [vmem:[#allocation8 + $0xa0] sm:$0xff]
      %v607 = vld [vmem:[#allocation8 + $0xa8] sm:$0xff]
      %v608 = vld [vmem:[#allocation8 + $0xb0] sm:$0xff]
      %v609 = vld [vmem:[#allocation8 + $0xb8] sm:$0xff]
      %v610 = vld [vmem:[#allocation8 + $0xc0] sm:$0xff]
      %v611 = vld [vmem:[#allocation8 + $0xc8] sm:$0xff]
      %v612 = vld [vmem:[#allocation8 + $0xd0] sm:$0xff]
      %v613 = vld [vmem:[#allocation8 + $0xd8] sm:$0xff]
      %v614 = vld [vmem:[#allocation8 + $0xe0] sm:$0xff]
      %v615 = vld [vmem:[#allocation8 + $0xe8] sm:$0xff]
      %v616 = vld [vmem:[#allocation8 + $0xf0] sm:$0xff]
      %v617 = vld [vmem:[#allocation8 + $0xf8] sm:$0xff]
      %v618 = vld [vmem:[%s4] sm:$0x1]
      %v620 = vlaneseq
      %v621 = vshrl.u32 %v620, 7
      %v622 = vsub.s32 0, %v621
      %v623 = vrot.slane %v618, %v622
      %625 = vmatprep.subr.mxu0 0.0
      %626 = vmatpush1.msra.mxu0 %v586
      %627 = vmatprep.subr.mxu0 0.0
      %628 = vmatpush1.msra.mxu0 %v587
      %629 = vmatprep.subr.mxu0 0.0
      %630 = vmatpush1.msra.mxu0 %v588
      %631 = vmatprep.subr.mxu0 0.0
      %632 = vmatpush1.msra.mxu0 %v589
      %633 = vmatprep.subr.mxu0 0.0
      %634 = vmatpush1.msra.mxu0 %v590
      %635 = vmatprep.subr.mxu0 0.0
      %636 = vmatpush1.msra.mxu0 %v591
      %637 = vmatprep.subr.mxu0 0.0
      %638 = vmatpush1.msra.mxu0 %v592
      %639 = vmatprep.subr.mxu0 0.0
      %640 = vmatpush1.msra.mxu0 %v593
      %641 = vmatprep.subr.mxu0 0.0
      %642 = vmatpush1.msra.mxu0 %v594
      %643 = vmatprep.subr.mxu0 0.0
      %644 = vmatpush1.msra.mxu0 %v595
      %645 = vmatprep.subr.mxu0 0.0
      %646 = vmatpush1.msra.mxu0 %v596
      %647 = vmatprep.subr.mxu0 0.0
      %648 = vmatpush1.msra.mxu0 %v597
      %649 = vmatprep.subr.mxu0 0.0
      %650 = vmatpush1.msra.mxu0 %v598
      %651 = vmatprep.subr.mxu0 0.0
      %652 = vmatpush1.msra.mxu0 %v599
      %653 = vmatprep.subr.mxu0 0.0
      %654 = vmatpush1.msra.mxu0 %v600
      %655 = vmatprep.subr.mxu0 0.0
      %656 = vmatpush1.msra.mxu0 %v601
      %657 = vmatprep.subr.mxu0 0.0
      %658 = vmatpush1.msra.mxu0 %v602
      %659 = vmatprep.subr.mxu0 0.0
      %660 = vmatpush1.msra.mxu0 %v603
      %661 = vmatprep.subr.mxu0 0.0
      %662 = vmatpush1.msra.mxu0 %v604
      %663 = vmatprep.subr.mxu0 0.0
      %664 = vmatpush1.msra.mxu0 %v605
      %665 = vmatprep.subr.mxu0 0.0
      %666 = vmatpush1.msra.mxu0 %v606
      %667 = vmatprep.subr.mxu0 0.0
      %668 = vmatpush1.msra.mxu0 %v607
      %669 = vmatprep.subr.mxu0 0.0
      %670 = vmatpush1.msra.mxu0 %v608
      %671 = vmatprep.subr.mxu0 0.0
      %672 = vmatpush1.msra.mxu0 %v609
      %673 = vmatprep.subr.mxu0 0.0
      %674 = vmatpush1.msra.mxu0 %v610
      %675 = vmatprep.subr.mxu0 0.0
      %676 = vmatpush1.msra.mxu0 %v611
      %677 = vmatprep.subr.mxu0 0.0
      %678 = vmatpush1.msra.mxu0 %v612
      %679 = vmatprep.subr.mxu0 0.0
      %680 = vmatpush1.msra.mxu0 %v613
      %681 = vmatprep.subr.mxu0 0.0
      %682 = vmatpush1.msra.mxu0 %v614
      %683 = vmatprep.subr.mxu0 0.0
      %684 = vmatpush1.msra.mxu0 %v615
      %685 = vmatprep.subr.mxu0 0.0
      %686 = vmatpush1.msra.mxu0 %v616
      %687 = vmatprep.subr.mxu0 0.0
      %688 = vmatpush1.msra.mxu0 %v617
      %689 = vmatprep.mubr.f32.mxu0 %v555
      %690 = vmatmul.mubr.f32.gmra.mrb[0].mxu0 %v554
      %v691 = vpop.f32.mrb[0].mxu0
      %v692 = vadd.f32 %v623, %v691
      %v693 = vpop.f32.mrb[0].mxu0
      %694 = vmatprep.mubr.f32.mxu0 %v557
      %695 = vmatmul.mubr.f32.gmra.mrb[0].mxu0 %v556
      %v696 = vpop.f32.mrb[0].mxu0
      %v697 = vadd.f32 %v623, %v696
      %v698 = vpop.f32.mrb[0].mxu0
      %699 = vmatprep.mubr.f32.mxu0 %v559
      %700 = vmatmul.mubr.f32.gmra.mrb[0].mxu0 %v558
      %v701 = vpop.f32.mrb[0].mxu0
      %v702 = vadd.f32 %v623, %v701
      %v703 = vpop.f32.mrb[0].mxu0
      %704 = vmatprep.mubr.f32.mxu0 %v561
      %705 = vmatmul.mubr.f32.gmra.mrb[0].mxu0 %v560
      %v706 = vpop.f32.mrb[0].mxu0
      %v707 = vadd.f32 %v623, %v706
      %v708 = vpop.f32.mrb[0].mxu0
      %709 = vmatprep.mubr.f32.mxu0 %v563
      %710 = vmatmul.mubr.f32.gmra.mrb[0].mxu0 %v562
      %v711 = vpop.f32.mrb[0].mxu0
      %v712 = vadd.f32 %v623, %v711
      %v713 = vpop.f32.mrb[0].mxu0
      %714 = vmatprep.mubr.f32.mxu0 %v565
      %715 = vmatmul.mubr.f32.gmra.mrb[0].mxu0 %v564
      %v716 = vpop.f32.mrb[0].mxu0
      %v717 = vadd.f32 %v623, %v716
      %v718 = vpop.f32.mrb[0].mxu0
      %719 = vmatprep.mubr.f32.mxu0 %v567
      %720 = vmatmul.mubr.f32.gmra.mrb[0].mxu0 %v566
      %v721 = vpop.f32.mrb[0].mxu0
      %v722 = vadd.f32 %v623, %v721
      %v723 = vpop.f32.mrb[0].mxu0
      %724 = vmatprep.mubr.f32.mxu0 %v569
      %725 = vmatmul.mubr.f32.gmra.mrb[0].mxu0 %v568
      %v726 = vpop.f32.mrb[0].mxu0
      %v727 = vadd.f32 %v623, %v726
      %v728 = vpop.f32.mrb[0].mxu0
      %729 = vmatprep.mubr.f32.mxu0 %v571
      %730 = vmatmul.mubr.f32.gmra.mrb[0].mxu0 %v570
      %v731 = vpop.f32.mrb[0].mxu0
      %v732 = vadd.f32 %v623, %v731
      %v733 = vpop.f32.mrb[0].mxu0
      %734 = vmatprep.mubr.f32.mxu0 %v573
      %735 = vmatmul.mubr.f32.gmra.mrb[0].mxu0 %v572
      %v736 = vpop.f32.mrb[0].mxu0
      %v737 = vadd.f32 %v623, %v736
      %v738 = vpop.f32.mrb[0].mxu0
      %739 = vmatprep.mubr.f32.mxu0 %v575
      %740 = vmatmul.mubr.f32.gmra.mrb[0].mxu0 %v574
      %v741 = vpop.f32.mrb[0].mxu0
      %v742 = vadd.f32 %v623, %v741
      %v743 = vpop.f32.mrb[0].mxu0
      %744 = vmatprep.mubr.f32.mxu0 %v577
      %745 = vmatmul.mubr.f32.gmra.mrb[0].mxu0 %v576
      %v746 = vpop.f32.mrb[0].mxu0
      %v747 = vadd.f32 %v623, %v746
      %v748 = vpop.f32.mrb[0].mxu0
      %749 = vmatprep.mubr.f32.mxu0 %v579
      %750 = vmatmul.mubr.f32.gmra.mrb[0].mxu0 %v578
      %v751 = vpop.f32.mrb[0].mxu0
      %v752 = vadd.f32 %v623, %v751
      %v753 = vpop.f32.mrb[0].mxu0
      %754 = vmatprep.mubr.f32.mxu0 %v581
      %755 = vmatmul.mubr.f32.gmra.mrb[0].mxu0 %v580
      %v756 = vpop.f32.mrb[0].mxu0
      %v757 = vadd.f32 %v623, %v756
      %v758 = vpop.f32.mrb[0].mxu0
      %759 = vmatprep.mubr.f32.mxu0 %v583
      %760 = vmatmul.mubr.f32.gmra.mrb[0].mxu0 %v582
      %v761 = vpop.f32.mrb[0].mxu0
      %v762 = vadd.f32 %v623, %v761
      %v763 = vpop.f32.mrb[0].mxu0
      %764 = vmatprep.mubr.f32.mxu0 %v585
      %765 = vmatmul.mubr.f32.gmra.mrb[0].mxu0 %v584
      %v766 = vpop.f32.mrb[0].mxu0
      %v767 = vadd.f32 %v623, %v766
      %v768 = vpop.f32.mrb[0].mxu0
      %769 = vdwg.mxu0
      %v770 = vmax.f32 %v692, 0.0
      %v771 = vmax.f32 %v697, 0.0
      %v772 = vmax.f32 %v702, 0.0
      %v773 = vmax.f32 %v707, 0.0
      %v774 = vmax.f32 %v712, 0.0
      %v775 = vmax.f32 %v717, 0.0
      %v776 = vmax.f32 %v722, 0.0
      %v777 = vmax.f32 %v727, 0.0
      %v778 = vmax.f32 %v732, 0.0
      %v779 = vmax.f32 %v737, 0.0
      %v780 = vmax.f32 %v742, 0.0
      %v781 = vmax.f32 %v747, 0.0
      %v782 = vmax.f32 %v752, 0.0
      %v783 = vmax.f32 %v757, 0.0
      %v784 = vmax.f32 %v762, 0.0
      %v785 = vmax.f32 %v767, 0.0
      %786 = vst [vmem:[#allocation9] sm:$0xff] %v770
      %787 = vst [vmem:[#allocation9 + $0x8] sm:$0xff] %v771
      %788 = vst [vmem:[#allocation9 + $0x10] sm:$0xff] %v772
      %789 = vst [vmem:[#allocation9 + $0x18] sm:$0xff] %v773
      %790 = vst [vmem:[#allocation9 + $0x20] sm:$0xff] %v774
      %791 = vst [vmem:[#allocation9 + $0x28] sm:$0xff] %v775
      %792 = vst [vmem:[#allocation9 + $0x30] sm:$0xff] %v776
      %793 = vst [vmem:[#allocation9 + $0x38] sm:$0xff] %v777
      %794 = vst [vmem:[#allocation9 + $0x40] sm:$0xff] %v778
      %795 = vst [vmem:[#allocation9 + $0x48] sm:$0xff] %v779
      %796 = vst [vmem:[#allocation9 + $0x50] sm:$0xff] %v780
      %797 = vst [vmem:[#allocation9 + $0x58] sm:$0xff] %v781
      %798 = vst [vmem:[#allocation9 + $0x60] sm:$0xff] %v782
      %799 = vst [vmem:[#allocation9 + $0x68] sm:$0xff] %v783
      %800 = vst [vmem:[#allocation9 + $0x70] sm:$0xff] %v784
      %801 = vst [vmem:[#allocation9 + $0x78] sm:$0xff] %v785
    $region45: #{tpu_custom_call.1} parent=1 // pred_fallthru
      _
    // Predicated region
    $region46: #{tpu_custom_call.1} parent=1 // pred_check
      _
    $region47: #{tpu_custom_call.1} parent=1 // pred_check_branch
      %803 = sbr.rel (0) target = $region49
    $region48: #{tpu_custom_call.1} parent=1 // pred_region
      %s805 = ssub.s32 2048, 2048
      %806 = vsyncadd [#allocation5], %s805
      %s807 = sshll.u32 [#allocation9], 4
      %s808 = int_to_ptr.vmem [resolvable:$true] %s807
      %813 = dma.vmem_to_hbm [thread:$0]  %s808, 2048, %s6, [#allocation5], 128, 128, 8
    $region49: #{tpu_custom_call.1} parent=1 // pred_fallthru
      _
    // Predicated region
    $region50: #{tpu_custom_call.1} parent=1 // pred_check
      _
    $region51: #{tpu_custom_call.1} parent=1 // pred_check_branch
      %815 = sbr.rel (0) target = $region53
    $region52: #{tpu_custom_call.1} parent=1 // pred_region
      %816 = dma.done [#allocation5], 2048
    $region53: #{tpu_custom_call.1} parent=1 // pred_fallthru
      _
    %817 = vsyncpa [#allocation4], 1
    %818 = vsyncpa [#allocation7], 1
    %819 = vsyncpa [#allocation5], 1

</llo_original>
